<compile_context>
chip_gen: v7x
topology: tpu7x:2x2x1
jax: 0.10.0
libtpu: 0.0.40
codegen_flags: <defaults>
</compile_context>

<pallas_src>
import functools

import jax
import jax.numpy as jnp
from jax.experimental import pallas as pl
from jax.experimental.pallas import tpu as pltpu


def _adain_kernel(x_ref, w_ref, b_ref, o_ref, *, eps, hw_true, tile_bc):
    # x_ref: (tile_bc, HW_pad)   w_ref/b_ref: (BC_pad, 1) resident   o_ref: (tile_bc, HW_pad)
    i = pl.program_id(0)
    row0 = pl.multiple_of(i * tile_bc, tile_bc)

    x = x_ref[...].astype(jnp.float32)
    inv_n = 1.0 / float(hw_true)

    # Per-row mean over the true spatial extent (padded lanes are zeros, so the
    # raw sum is already correct; just divide by the true HW).
    mean = jnp.sum(x, axis=-1, keepdims=True) * inv_n
    xc = x - mean  # hoisted; reused for variance and for the normalized output

    hw_pad = x.shape[-1]
    if hw_pad != hw_true:
        # Padded lanes have xc = -mean != 0: mask them out of the variance.
        lane = jax.lax.broadcasted_iota(jnp.int32, x.shape, 1)
        xc_sq = jnp.where(lane < hw_true, xc * xc, 0.0)
    else:
        xc_sq = xc * xc
    var = jnp.sum(xc_sq, axis=-1, keepdims=True) * inv_n  # biased, matches batch_norm(training=True)

    inv_std = jax.lax.rsqrt(var + eps)  # EUP slot

    w = w_ref[pl.ds(row0, tile_bc), :].astype(jnp.float32)
    b = b_ref[pl.ds(row0, tile_bc), :].astype(jnp.float32)

    # Fold inv_std * w into one per-row scalar before the full-tile multiply.
    o_ref[...] = (xc * (inv_std * w) + b).astype(o_ref.dtype)


def adaptive_instance_norm_2d(x, weight, bias, eps=1e-5):
    """AdaptiveInstanceNorm2D forward.

    x:      (B, C, H, W)   NCHW, same as the PyTorch module
    weight: (B*C,)         AdaIN scale (assigned externally in PyTorch)
    bias:   (B*C,)         AdaIN shift
    """
    B, C, H, W = x.shape
    BC, HW = B * C, H * W
    dtype = x.dtype
    itemsize = jnp.dtype(dtype).itemsize

    # Sublane alignment: 8 rows for 32-bit, 16 for bf16/fp16, 32 for 8-bit.
    row_align = 8 * max(1, 4 // itemsize)
    # Lane-dense last dim (multiple of 128) -> unmasked vector stores.
    HW_pad = ((HW + 127) // 128) * 128

    # VMEM-budget-driven tile: double-buffered in + out blocks plus ~3 f32
    # temporaries per element.  ~20 MiB budget leaves headroom even on v7x
    # (64 MiB physical VMEM per TC).
    bytes_per_row = HW_pad * (4 * itemsize + 3 * 4)
    vmem_budget = 20 * 1024 * 1024
    max_rows_vmem = max(row_align, (vmem_budget // bytes_per_row) // row_align * row_align)

    BC_al = ((BC + row_align - 1) // row_align) * row_align
    # Target multiple grid steps (up to 8) so the "parallel" axis can be
    # sharded across v7x's two TensorCores and the pipeline has work.
    desired_steps = min(8, max(1, BC_al // row_align))
    rows_per_step = max(row_align, (BC_al // desired_steps) // row_align * row_align)

    tile_bc = int(min(max_rows_vmem, rows_per_step))
    BC_pad = ((BC + tile_bc - 1) // tile_bc) * tile_bc
    grid = (BC_pad // tile_bc,)

    x2 = x.reshape(BC, HW)
    if BC_pad != BC or HW_pad != HW:
        x2 = jnp.pad(x2, ((0, BC_pad - BC), (0, HW_pad - HW)))
    w2 = weight.reshape(BC, 1)
    b2 = bias.reshape(BC, 1)
    if BC_pad != BC:
        w2 = jnp.pad(w2, ((0, BC_pad - BC), (0, 0)))
        b2 = jnp.pad(b2, ((0, BC_pad - BC), (0, 0)))

    cost = pl.CostEstimate(
        flops=6 * BC * HW,
        transcendentals=BC,
        bytes_accessed=2 * BC * HW * itemsize + 2 * BC * itemsize,
    )

    out2 = pl.pallas_call(
        functools.partial(_adain_kernel, eps=float(eps), hw_true=HW, tile_bc=tile_bc),
        out_shape=jax.ShapeDtypeStruct((BC_pad, HW_pad), dtype),
        grid_spec=pltpu.PrefetchScalarGridSpec(
            num_scalar_prefetch=0,
            grid=grid,
            in_specs=[
                pl.BlockSpec((tile_bc, HW_pad), lambda i: (i, 0)),
                # weight / bias: full arrays, constant block index -> VMEM
                # resident once, no per-step re-DMA.
                pl.BlockSpec((BC_pad, 1), lambda i: (0, 0)),
                pl.BlockSpec((BC_pad, 1), lambda i: (0, 0)),
            ],
            out_specs=pl.BlockSpec((tile_bc, HW_pad), lambda i: (i, 0)),
        ),
        compiler_params=pltpu.CompilerParams(
            dimension_semantics=("parallel",),
            vmem_limit_bytes=48 * 1024 * 1024,
        ),
        cost_estimate=cost,
    )(x2, w2, b2)

    if BC_pad != BC or HW_pad != HW:
        out2 = out2[:BC, :HW]
    return out2.reshape(B, C, H, W)


def reference(x, weight, bias, eps=1e-5):
    B, C, H, W = x.shape
    xr = x.reshape(B * C, H * W).astype(jnp.float32)
    mean = xr.mean(axis=-1, keepdims=True)
    var = ((xr - mean) ** 2).mean(axis=-1, keepdims=True)
    y = (xr - mean) / jnp.sqrt(var + eps) * weight[:, None] + bias[:, None]
    return y.reshape(B, C, H, W).astype(x.dtype)


if __name__ == "__main__":
    key = jax.random.PRNGKey(0)

    # Shape 1: aligned case (BC multiple of 8, HW multiple of 128).
    # Shape 2: ragged case (BC=6, HW=49) exercising the padding/mask path.
    for (B, C, H, W) in [(2, 4, 16, 16), (2, 3, 7, 7)]:
        key, kx, kw, kb = jax.random.split(key, 4)
        x = jax.random.normal(kx, (B, C, H, W), dtype=jnp.float32)
        # AdaIN weight/bias are assigned externally per (batch, channel); shape (B*C,)
        weight = jax.random.normal(kw, (B * C,), dtype=jnp.float32) + 1.0
        bias = jax.random.normal(kb, (B * C,), dtype=jnp.float32) * 0.1
        # NOTE: running_mean / running_var buffers exist in the PyTorch module but
        # do not affect the output when training=True (batch stats are used).

        out = adaptive_instance_norm_2d(x, weight, bias)
        jax.block_until_ready(out)

        ref = reference(x, weight, bias)
        assert out.shape == (B, C, H, W)
        assert jnp.allclose(out, ref, atol=1e-4, rtol=1e-4), (B, C, H, W)

    print("KERNEL_OK")
</pallas_src>

<mosaic_0001>
module attributes {stable_mosaic.version = 11 : i64} {
  func.func @_adain_kernel(%arg0: i32, %arg1: memref<8x256xf32, #tpu.memory_space<vmem>>, %arg2: memref<8x1xf32, #tpu.memory_space<vmem>>, %arg3: memref<8x1xf32, #tpu.memory_space<vmem>>, %arg4: memref<8x256xf32, #tpu.memory_space<vmem>>) attributes {dimension_semantics = [#tpu.dimension_semantics<parallel>], iteration_bounds = array<i64: 1>, scalar_prefetch = 0 : i64, scratch_operands = 0 : i64, tpu.core_type = #tpu.core_type<tc>, window_params = [{transform_indices = @transform_0, window_bounds = array<i64: 8, 256>}, {pipeline_mode = #tpu.pipeline_mode<synchronous>, transform_indices = @transform_1, window_bounds = array<i64: 8, 1>}, {pipeline_mode = #tpu.pipeline_mode<synchronous>, transform_indices = @transform_2, window_bounds = array<i64: 8, 1>}, {transform_indices = @transform_3, window_bounds = array<i64: 8, 256>}]} {
    %c8_i32 = arith.constant 8 : i32
    %0 = arith.muli %arg0, %c8_i32 : i32
    %1 = tpu.assume_multiple %0, 8 : i32
    %c0 = arith.constant 0 : index
    %c0_0 = arith.constant 0 : index
    %2 = vector.load %arg1[%c0, %c0_0] : memref<8x256xf32, #tpu.memory_space<vmem>>, vector<8x256xf32>
    %cst = arith.constant dense<0.000000e+00> : vector<8xf32>
    %3 = vector.multi_reduction <add>, %2, %cst [1] : vector<8x256xf32> to vector<8xf32>
    %4 = vector.shape_cast %3 : vector<8xf32> to vector<8x1xf32>
    %cst_1 = arith.constant 3.906250e-03 : f32
    %5 = vector.broadcast %cst_1 : f32 to vector<8x1xf32>
    %6 = arith.mulf %4, %5 : vector<8x1xf32>
    %7 = vector.broadcast %6 : vector<8x1xf32> to vector<8x256xf32>
    %8 = arith.subf %2, %7 : vector<8x256xf32>
    %9 = arith.mulf %8, %8 : vector<8x256xf32>
    %cst_2 = arith.constant dense<0.000000e+00> : vector<8xf32>
    %10 = vector.multi_reduction <add>, %9, %cst_2 [1] : vector<8x256xf32> to vector<8xf32>
    %11 = vector.shape_cast %10 : vector<8xf32> to vector<8x1xf32>
    %cst_3 = arith.constant 3.906250e-03 : f32
    %12 = vector.broadcast %cst_3 : f32 to vector<8x1xf32>
    %13 = arith.mulf %11, %12 : vector<8x1xf32>
    %cst_4 = arith.constant 9.99999974E-6 : f32
    %14 = vector.broadcast %cst_4 : f32 to vector<8x1xf32>
    %15 = arith.addf %13, %14 : vector<8x1xf32>
    %16 = math.rsqrt %15 : vector<8x1xf32>
    %17 = arith.index_cast %1 : i32 to index
    %c0_5 = arith.constant 0 : index
    %18 = vector.load %arg2[%17, %c0_5] : memref<8x1xf32, #tpu.memory_space<vmem>>, vector<8x1xf32>
    %19 = arith.index_cast %1 : i32 to index
    %c0_6 = arith.constant 0 : index
    %20 = vector.load %arg3[%19, %c0_6] : memref<8x1xf32, #tpu.memory_space<vmem>>, vector<8x1xf32>
    %21 = arith.mulf %16, %18 : vector<8x1xf32>
    %22 = vector.broadcast %21 : vector<8x1xf32> to vector<8x256xf32>
    %23 = arith.mulf %8, %22 : vector<8x256xf32>
    %24 = vector.broadcast %20 : vector<8x1xf32> to vector<8x256xf32>
    %25 = arith.addf %23, %24 : vector<8x256xf32>
    %c0_7 = arith.constant 0 : index
    %c0_8 = arith.constant 0 : index
    %26 = vector.load %arg4[%c0_7, %c0_8] : memref<8x256xf32, #tpu.memory_space<vmem>>, vector<8x256xf32>
    tpu.vector_store %arg4[%c0_7, %c0_8], %25 {strides = array<i32>} : memref<8x256xf32, #tpu.memory_space<vmem>>, vector<8x256xf32>,
    return
  }
  func.func @transform_0(%arg0: i32) -> (i32, i32) {
    %c0_i32 = arith.constant 0 : i32
    %c0_i32_0 = arith.constant 0 : i32
    return %arg0, %c0_i32 : i32, i32
  }
  func.func @transform_1(%arg0: i32) -> (i32, i32) {
    %c0_i32 = arith.constant 0 : i32
    %c0_i32_0 = arith.constant 0 : i32
    %c0_i32_1 = arith.constant 0 : i32
    return %c0_i32, %c0_i32_0 : i32, i32
  }
  func.func @transform_2(%arg0: i32) -> (i32, i32) {
    %c0_i32 = arith.constant 0 : i32
    %c0_i32_0 = arith.constant 0 : i32
    %c0_i32_1 = arith.constant 0 : i32
    return %c0_i32, %c0_i32_0 : i32, i32
  }
  func.func @transform_3(%arg0: i32) -> (i32, i32) {
    %c0_i32 = arith.constant 0 : i32
    %c0_i32_0 = arith.constant 0 : i32
    return %arg0, %c0_i32 : i32, i32
  }
}

</mosaic_0001>

<llo_original>
// kernel: tpu_custom_call.1
$region0: #{tpu_custom_call.1}
  #allocation0 [shape = 'u32[]', space=smem, size = 0x4, offset = 0x4, fixed_abs, tag = 'smem constant byte address 0x4 - core index']
  #allocation1 [shape = 'u32[144,128]{1,0:T(1,128)}', space=vmem, size = 0x12000, scoped, tag = 'internal scratch']
  %s0 = inlined_call_operand.vmem [shape: f32[8,256], index: 0, kind: input, shape index: {}]
  %s1 = inlined_call_operand.vmem [shape: f32[8,1], index: 1, kind: input, shape index: {}]
  %s2 = inlined_call_operand.vmem [shape: f32[8,1], index: 2, kind: input, shape index: {}]
  %s3 = inlined_call_operand.hbm [shape: f32[8,256], index: 3, kind: output, shape index: {}]
  %s4 = sld [smem:[#allocation0]]
  $region22: #{tpu_custom_call.1} parent=0
    _
  %s6 = ssub.s32 1, %s4
  %s7 = scalar_select 0, %s6, %s4
  $region1: #{tpu_custom_call.1} parent=0
    #allocation2 [shape = 'u8[8192]{0}', space=vmem, size = 0x2000, scoped, tag = 'output window, operand 0, single buffered']
    #allocation3 [shape = 's32[1]{0}', space=sflag, size = 0x4, scoped, tag = 'scoped memory for tpu_custom_call.1']
    %8 = vsyncpa [#allocation3], 0
    // Predicated region
    $region2: #{tpu_custom_call.1} parent=1 // pred_check
      _
    $region3: #{tpu_custom_call.1} parent=1 // pred_check_branch
      %10 = sbr.rel (0) target = $region5
    $region4: #{tpu_custom_call.1} parent=1 // pred_region
      _
    $region5: #{tpu_custom_call.1} parent=1 // pred_fallthru
      _
    // Predicated region
    $region6: #{tpu_custom_call.1} parent=1 // pred_check
      _
    $region7: #{tpu_custom_call.1} parent=1 // pred_check_branch
      %12 = sbr.rel (0) target = $region9
    $region8: #{tpu_custom_call.1} parent=1 // pred_region
      _
    $region9: #{tpu_custom_call.1} parent=1 // pred_fallthru
      _
    // Predicated region
    $region10: #{tpu_custom_call.1} parent=1 // pred_check
      _
    $region11: #{tpu_custom_call.1} parent=1 // pred_check_branch
      %14 = sbr.rel (0) target = $region13
    $region12: #{tpu_custom_call.1} parent=1 // pred_region
      _
    $region13: #{tpu_custom_call.1} parent=1 // pred_fallthru
      _
    %s15 = smul.u32 0, 8
    %v16 = vld [vmem:[%s0] sm:$0xff]
    %v17 = vld [vmem:[%s0 + $0x8] sm:$0xff]
    %v18 = vadd.f32 %v16, %v17
    %19 = vadd.xlane.f32.xlu0 %v18
    %v20 = vpop.xlane.xlu0 %19
    %v21 = vmul.f32 %v20, 0.00390625
    %v22 = vsub.f32 %v16, %v21
    %v23 = vsub.f32 %v17, %v21
    %v24 = vmul.f32 %v22, %v22
    %v25 = vmul.f32 %v23, %v23
    %v26 = vadd.f32 %v24, %v25
    %27 = vadd.xlane.f32.xlu0 %v26
    %v28 = vpop.xlane.xlu0 %27
    %v29 = vmul.f32 %v28, 0.00390625
    %v30 = vadd.f32 %v29, 1e-05
    %v31 = vrsqrt.pop %v30
    %s32 = scalar_lea.vmem %s1, %s15
    %v33 = vld [vmem:[%s32] sm:$0xff]
    %s34 = scalar_lea.vmem %s2, %s15
    %v35 = vld [vmem:[%s34] sm:$0xff]
    %v36 = vmul.f32 %v31, %v33
    %38 = vset.pattern.permute.xlu0 0
    %39 = vperm.xlu0 %38, %v36
    %v40 = vpop.permute.xlu0 %39
    %v42 = vmul.f32 %v22, %v40
    %v43 = vmul.f32 %v23, %v40
    %45 = vset.pattern.permute.xlu0 0
    %46 = vperm.xlu0 %45, %v35
    %v47 = vpop.permute.xlu0 %46
    %v49 = vadd.f32 %v42, %v47
    %v50 = vadd.f32 %v43, %v47
    %51 = vst [vmem:[#allocation2] sm:$0xff] %v49
    %52 = vst [vmem:[#allocation2 + $0x8] sm:$0xff] %v50
    // Predicated region
    $region14: #{tpu_custom_call.1} parent=1 // pred_check
      _
    $region15: #{tpu_custom_call.1} parent=1 // pred_check_branch
      %54 = sbr.rel (0) target = $region17
    $region16: #{tpu_custom_call.1} parent=1 // pred_region
      %s56 = ssub.s32 256, 256
      %57 = vsyncadd [#allocation3], %s56
      %s59 = sshll.u32 [#allocation2], 4
      %s60 = int_to_ptr.vmem [resolvable:$true] %s59
      %62 = dma.vmem_to_hbm [thread:$0]  %s60, 256, %s3, [#allocation3]
    $region17: #{tpu_custom_call.1} parent=1 // pred_fallthru
      _
    // Predicated region
    $region18: #{tpu_custom_call.1} parent=1 // pred_check
      _
    $region19: #{tpu_custom_call.1} parent=1 // pred_check_branch
      %64 = sbr.rel (0) target = $region21
    $region20: #{tpu_custom_call.1} parent=1 // pred_region
      %65 = dma.done [#allocation3], 256
    $region21: #{tpu_custom_call.1} parent=1 // pred_fallthru
      _
    %66 = vsyncpa [#allocation3], 1

</llo_original>
